<compile_context>
chip_gen: v5e
topology: v5e:2x2
jax: 0.10.0
libtpu: 0.0.40
codegen_flags: <defaults>
</compile_context>

<pallas_src>
import jax
import jax.numpy as jnp
from jax.experimental import pallas as pl
from jax.experimental.pallas import tpu as pltpu

BN_EPS = 1e-5


def _round_up(v, m):
    return (v + m - 1) // m * m


def _pad2d(a, rows, cols):
    return jnp.pad(a, ((0, rows - a.shape[0]), (0, cols - a.shape[1])))


# --------------------------------------------------------------------------- kernel
def graphnet_kernel(a_ref, p_ref, bnw_ref, x_ref,
                    w_enc_ref, b_enc_ref,
                    w1_ref, b1_ref, w2_ref, b2_ref, w3_ref, b3_ref,
                    wa_ref, ba_ref, wb_ref, bb_ref, wc_ref, bc_ref,
                    out_ref):
    f32 = jnp.float32
    bf16 = jnp.bfloat16

    A = a_ref[...]            # (Np, Np) bf16 normalized adjacency (self loops included)
    P = p_ref[...]            # (Gp, Np) bf16 mean-pool matrix
    bn_w = bnw_ref[...]       # (Np, 1)  f32  = row_mask / num_real_nodes

    # node_encoder: Linear + ReLU   (bf16 MXU operands, f32 accumulation)
    h = jnp.dot(x_ref[...].astype(bf16), w_enc_ref[...],
                preferred_element_type=f32) + b_enc_ref[...]
    h = jnp.maximum(h, 0.0)

    def gcn_bn_relu(h_in, w, b):
        # GCNConv: A_hat @ (X W) + bias   (bias added after propagation, as in PyG)
        z = jnp.dot(h_in.astype(bf16), w, preferred_element_type=f32)
        z = jnp.dot(A, z.astype(bf16), preferred_element_type=f32) + b
        # BatchNorm1d (training-mode batch stats over real nodes only, gamma=1, beta=0)
        mean = jnp.sum(bn_w * z, axis=0, keepdims=True)
        diff = z - mean
        var = jnp.sum(bn_w * diff * diff, axis=0, keepdims=True)
        inv_std = jax.lax.rsqrt(var + BN_EPS)          # EUP slot, hoisted
        return jnp.maximum(diff * inv_std, 0.0)

    x1 = gcn_bn_relu(h, w1_ref[...], b1_ref[...])
    x2 = gcn_bn_relu(x1, w2_ref[...], b2_ref[...]) + x1
    x3 = gcn_bn_relu(x2, w3_ref[...], b3_ref[...]) + x2

    # global_mean_pool
    pooled = jnp.dot(P, x3.astype(bf16), preferred_element_type=f32)   # (Gp, Hp)

    # three prediction heads fused into 3 matmuls (block-diagonal Wb / Wc)
    a1 = jnp.tanh(jnp.dot(pooled.astype(bf16), wa_ref[...],
                          preferred_element_type=f32) + ba_ref[...])
    a2 = jnp.tanh(jnp.dot(a1.astype(bf16), wb_ref[...],
                          preferred_element_type=f32) + bb_ref[...])
    out = jnp.dot(a2.astype(bf16), wc_ref[...],
                  preferred_element_type=f32) + bc_ref[...]
    out_ref[...] = out        # single lane-dense (Gp, 128) store


# --------------------------------------------------------------------------- host glue
def build_adjacency_and_pool(edge_index, batch, num_nodes, num_graphs):
    src = edge_index[0]
    dst = edge_index[1]
    A = jnp.zeros((num_nodes, num_nodes), jnp.float32)
    A = A.at[dst, src].add(1.0)                     # message j -> i, duplicates sum
    diag = jnp.diagonal(A)
    # add_remaining_self_loops: only add a self loop where none exists
    A = A + jnp.diag(jnp.where(diag > 0, 0.0, 1.0))
    deg = jnp.sum(A, axis=1)
    d_inv_sqrt = jnp.where(deg > 0, jax.lax.rsqrt(deg), 0.0)
    a_hat = d_inv_sqrt[:, None] * A * d_inv_sqrt[None, :]

    one_hot = (batch[None, :] == jnp.arange(num_graphs)[:, None]).astype(jnp.float32)
    counts = jnp.maximum(jnp.sum(one_hot, axis=1, keepdims=True), 1.0)
    pool = one_hot / counts                          # (G, N), rows = 1/|graph|
    return a_hat, pool


def _fuse_heads(params, h, h2, h_pad, ha_pad, hb_pad, out_pad):
    """Concatenate head-A weights and build block-diagonal B/C so that 3 heads cost
    3 matmuls and one store. Padded rows/cols are zero, so tanh(0)=0 slack lanes are
    annihilated by the zero weight rows downstream."""
    f32 = jnp.float32
    wa = jnp.zeros((h_pad, ha_pad), f32)
    ba = jnp.zeros((1, ha_pad), f32)
    wb = jnp.zeros((ha_pad, hb_pad), f32)
    bb = jnp.zeros((1, hb_pad), f32)
    wc = jnp.zeros((hb_pad, out_pad), f32)
    bc = jnp.zeros((1, out_pad), f32)
    for i in range(3):
        wa = wa.at[:h, i * h:(i + 1) * h].set(params["wha"][i])
        ba = ba.at[:, i * h:(i + 1) * h].set(params["bha"][i])
        wb = wb.at[i * h:(i + 1) * h, i * h2:(i + 1) * h2].set(params["whb"][i])
        bb = bb.at[:, i * h2:(i + 1) * h2].set(params["bhb"][i])
        wc = wc.at[i * h2:(i + 1) * h2, i:i + 1].set(params["whc"][i])
        bc = bc.at[:, i:i + 1].set(params["bhc"][i])
    return wa, ba, wb, bb, wc, bc


def graphnet_forward(x, edge_index, batch, params, *, num_graphs, hidden_dim):
    bf16 = jnp.bfloat16
    n, node_dim = x.shape
    h = hidden_dim
    h2 = h // 2

    # padded (lane/sublane aligned) sizes
    n_pad = _round_up(n, 8)
    g_pad = _round_up(num_graphs, 8)
    d_pad = _round_up(node_dim, 128)
    h_pad = _round_up(h, 128)
    ha_pad = _round_up(3 * h, 128)
    hb_pad = _round_up(3 * h2, 128)
    out_pad = 128

    a_hat, pool = build_adjacency_and_pool(edge_index, batch, n, num_graphs)
    a_pad = _pad2d(a_hat, n_pad, n_pad).astype(bf16)
    p_pad = _pad2d(pool, g_pad, n_pad).astype(bf16)
    x_pad = _pad2d(x, n_pad, d_pad)
    # BN row weights: mask over real nodes / N  (keeps stats exact under row padding)
    bn_w = (jnp.arange(n_pad) < n).astype(jnp.float32)[:, None] / float(n)

    w_enc = _pad2d(params["w_enc"], d_pad, h_pad).astype(bf16)
    b_enc = _pad2d(params["b_enc"], 1, h_pad)
    w1 = _pad2d(params["w1"], h_pad, h_pad).astype(bf16)
    b1 = _pad2d(params["b1"], 1, h_pad)
    w2 = _pad2d(params["w2"], h_pad, h_pad).astype(bf16)
    b2 = _pad2d(params["b2"], 1, h_pad)
    w3 = _pad2d(params["w3"], h_pad, h_pad).astype(bf16)
    b3 = _pad2d(params["b3"], 1, h_pad)

    wa, ba, wb, bb, wc, bc = _fuse_heads(params, h, h2, h_pad, ha_pad, hb_pad, out_pad)
    wa, wb, wc = wa.astype(bf16), wb.astype(bf16), wc.astype(bf16)

    args = (a_pad, p_pad, bn_w, x_pad,
            w_enc, b_enc, w1, b1, w2, b2, w3, b3,
            wa, ba, wb, bb, wc, bc)

    flops = (2 * n_pad * d_pad * h_pad
             + 3 * (2 * n_pad * h_pad * h_pad + 2 * n_pad * n_pad * h_pad)
             + 2 * g_pad * n_pad * h_pad
             + 2 * g_pad * (h_pad * ha_pad + ha_pad * hb_pad + hb_pad * out_pad))
    transcendentals = 3 * h_pad + g_pad * (ha_pad + hb_pad)
    bytes_accessed = (sum(int(a.size) * a.dtype.itemsize for a in args)
                      + g_pad * out_pad * 4)
    cost = pl.CostEstimate(flops=flops, transcendentals=transcendentals,
                           bytes_accessed=bytes_accessed)

    vmem = pl.BlockSpec(memory_space=pltpu.MemorySpace.VMEM)
    out = pl.pallas_call(
        graphnet_kernel,
        out_shape=jax.ShapeDtypeStruct((g_pad, out_pad), jnp.float32),
        in_specs=[vmem] * len(args),
        out_specs=vmem,
        cost_estimate=cost,
        compiler_params=pltpu.CompilerParams(vmem_limit_bytes=32 * 1024 * 1024),
    )(*args)

    return {
        "energy": out[:num_graphs, 0:1],
        "KS_gap": out[:num_graphs, 1:2],
        "E_gap": out[:num_graphs, 2:3],
    }


# --------------------------------------------------------------------------- params
def kaiming_normal(key, shape, fan_in):
    # nn.init.kaiming_normal_(nonlinearity='leaky_relu', a=0): std = sqrt(2 / fan_in)
    return jax.random.normal(key, shape, jnp.float32) * jnp.sqrt(2.0 / fan_in)


def init_params(key, node_dim, hidden_dim):
    h, h2 = hidden_dim, hidden_dim // 2
    keys = jax.random.split(key, 16)
    return {
        "w_enc": kaiming_normal(keys[0], (node_dim, h), node_dim),
        "b_enc": jnp.zeros((1, h), jnp.float32),
        "w1": kaiming_normal(keys[1], (h, h), h),
        "b1": jnp.zeros((1, h), jnp.float32),
        "w2": kaiming_normal(keys[2], (h, h), h),
        "b2": jnp.zeros((1, h), jnp.float32),
        "w3": kaiming_normal(keys[3], (h, h), h),
        "b3": jnp.zeros((1, h), jnp.float32),
        # stacked per-head weights (energy, KS_gap, E_gap); fused host-side
        "wha": jnp.stack([kaiming_normal(keys[4 + i], (h, h), h) for i in range(3)]),
        "bha": jnp.zeros((3, 1, h), jnp.float32),
        "whb": jnp.stack([kaiming_normal(keys[7 + i], (h, h2), h) for i in range(3)]),
        "bhb": jnp.zeros((3, 1, h2), jnp.float32),
        "whc": jnp.stack([kaiming_normal(keys[10 + i], (h2, 1), h2) for i in range(3)]),
        "bhc": jnp.zeros((3, 1, 1), jnp.float32),
    }


# --------------------------------------------------------------------------- demo
if __name__ == "__main__":
    node_dim, edge_dim, hidden_dim, output_dim = 8, 4, 32, 1
    num_nodes, num_graphs, num_edges = 16, 2, 24

    key = jax.random.PRNGKey(0)
    k_x, k_e, k_p = jax.random.split(key, 3)

    x = jax.random.normal(k_x, (num_nodes, node_dim), jnp.float32)
    edge_index = jax.random.randint(k_e, (2, num_edges), 0, num_nodes, jnp.int32)
    batch = jnp.concatenate([
        jnp.zeros((num_nodes // 2,), jnp.int32),
        jnp.ones((num_nodes - num_nodes // 2,), jnp.int32),
    ])

    params = init_params(k_p, node_dim, hidden_dim)

    fwd = jax.jit(graphnet_forward, static_argnames=("num_graphs", "hidden_dim"))
    out = fwd(x, edge_index, batch, params,
              num_graphs=num_graphs, hidden_dim=hidden_dim)
    jax.block_until_ready(out)

    assert out["energy"].shape == (num_graphs, 1)
    assert out["KS_gap"].shape == (num_graphs, 1)
    assert out["E_gap"].shape == (num_graphs, 1)
    for v in out.values():
        assert bool(jnp.all(jnp.isfinite(v)))
    print("KERNEL_OK")
</pallas_src>

<mosaic_0001>
module attributes {stable_mosaic.version = 11 : i64} {
  func.func @graphnet_kernel(%arg0: memref<16x16xbf16, #tpu.memory_space<vmem>>, %arg1: memref<8x16xbf16, #tpu.memory_space<vmem>>, %arg2: memref<16x1xf32, #tpu.memory_space<vmem>>, %arg3: memref<16x128xf32, #tpu.memory_space<vmem>>, %arg4: memref<128x128xbf16, #tpu.memory_space<vmem>>, %arg5: memref<1x128xf32, #tpu.memory_space<vmem>>, %arg6: memref<128x128xbf16, #tpu.memory_space<vmem>>, %arg7: memref<1x128xf32, #tpu.memory_space<vmem>>, %arg8: memref<128x128xbf16, #tpu.memory_space<vmem>>, %arg9: memref<1x128xf32, #tpu.memory_space<vmem>>, %arg10: memref<128x128xbf16, #tpu.memory_space<vmem>>, %arg11: memref<1x128xf32, #tpu.memory_space<vmem>>, %arg12: memref<128x128xbf16, #tpu.memory_space<vmem>>, %arg13: memref<1x128xf32, #tpu.memory_space<vmem>>, %arg14: memref<128x128xbf16, #tpu.memory_space<vmem>>, %arg15: memref<1x128xf32, #tpu.memory_space<vmem>>, %arg16: memref<128x128xbf16, #tpu.memory_space<vmem>>, %arg17: memref<1x128xf32, #tpu.memory_space<vmem>>, %arg18: memref<8x128xf32, #tpu.memory_space<vmem>>) attributes {dimension_semantics = [], scalar_prefetch = 0 : i64, scratch_operands = 0 : i64, tpu.core_type = #tpu.core_type<tc>} {
    %c0 = arith.constant 0 : index
    %c0_0 = arith.constant 0 : index
    %0 = vector.load %arg0[%c0, %c0_0] : memref<16x16xbf16, #tpu.memory_space<vmem>>, vector<16x16xbf16>
    %c0_1 = arith.constant 0 : index
    %c0_2 = arith.constant 0 : index
    %1 = vector.load %arg1[%c0_1, %c0_2] : memref<8x16xbf16, #tpu.memory_space<vmem>>, vector<8x16xbf16>
    %c0_3 = arith.constant 0 : index
    %c0_4 = arith.constant 0 : index
    %2 = vector.load %arg2[%c0_3, %c0_4] : memref<16x1xf32, #tpu.memory_space<vmem>>, vector<16x1xf32>
    %c0_5 = arith.constant 0 : index
    %c0_6 = arith.constant 0 : index
    %3 = vector.load %arg3[%c0_5, %c0_6] : memref<16x128xf32, #tpu.memory_space<vmem>>, vector<16x128xf32>
    %4 = arith.truncf %3 : vector<16x128xf32> to vector<16x128xbf16>
    %c0_7 = arith.constant 0 : index
    %c0_8 = arith.constant 0 : index
    %5 = vector.load %arg4[%c0_7, %c0_8] : memref<128x128xbf16, #tpu.memory_space<vmem>>, vector<128x128xbf16>
    %cst = arith.constant dense<0.000000e+00> : vector<16x128xf32>
    %6 = tpu.matmul %4, %5, %cst {dimension_numbers = #tpu.dot_dimension_numbers<[1], [0], [0], [1], [0, 0, 1, 1], [], []>} : vector<16x128xbf16>, vector<128x128xbf16>, vector<16x128xf32> -> vector<16x128xf32>
    %c0_9 = arith.constant 0 : index
    %c0_10 = arith.constant 0 : index
    %7 = vector.load %arg5[%c0_9, %c0_10] : memref<1x128xf32, #tpu.memory_space<vmem>>, vector<1x128xf32>
    %8 = vector.broadcast %7 : vector<1x128xf32> to vector<16x128xf32>
    %9 = arith.addf %6, %8 : vector<16x128xf32>
    %cst_11 = arith.constant 0.000000e+00 : f32
    %10 = vector.broadcast %cst_11 : f32 to vector<16x128xf32>
    %11 = arith.maximumf %9, %10 : vector<16x128xf32>
    %c0_12 = arith.constant 0 : index
    %c0_13 = arith.constant 0 : index
    %12 = vector.load %arg6[%c0_12, %c0_13] : memref<128x128xbf16, #tpu.memory_space<vmem>>, vector<128x128xbf16>
    %c0_14 = arith.constant 0 : index
    %c0_15 = arith.constant 0 : index
    %13 = vector.load %arg7[%c0_14, %c0_15] : memref<1x128xf32, #tpu.memory_space<vmem>>, vector<1x128xf32>
    %14 = arith.truncf %11 : vector<16x128xf32> to vector<16x128xbf16>
    %cst_16 = arith.constant dense<0.000000e+00> : vector<16x128xf32>
    %15 = tpu.matmul %14, %12, %cst_16 {dimension_numbers = #tpu.dot_dimension_numbers<[1], [0], [0], [1], [0, 0, 1, 1], [], []>} : vector<16x128xbf16>, vector<128x128xbf16>, vector<16x128xf32> -> vector<16x128xf32>
    %16 = arith.truncf %15 : vector<16x128xf32> to vector<16x128xbf16>
    %cst_17 = arith.constant dense<0.000000e+00> : vector<16x128xf32>
    %17 = tpu.matmul %0, %16, %cst_17 {dimension_numbers = #tpu.dot_dimension_numbers<[1], [0], [0], [1], [0, 0, 1, 1], [], []>} : vector<16x16xbf16>, vector<16x128xbf16>, vector<16x128xf32> -> vector<16x128xf32>
    %18 = vector.broadcast %13 : vector<1x128xf32> to vector<16x128xf32>
    %19 = arith.addf %17, %18 : vector<16x128xf32>
    %20 = vector.broadcast %2 : vector<16x1xf32> to vector<16x128xf32>
    %21 = arith.mulf %20, %19 : vector<16x128xf32>
    %cst_18 = arith.constant dense<0.000000e+00> : vector<128xf32>
    %22 = vector.multi_reduction <add>, %21, %cst_18 [0] : vector<16x128xf32> to vector<128xf32>
    %23 = vector.shape_cast %22 : vector<128xf32> to vector<1x128xf32>
    %24 = vector.broadcast %23 : vector<1x128xf32> to vector<16x128xf32>
    %25 = arith.subf %19, %24 : vector<16x128xf32>
    %26 = vector.broadcast %2 : vector<16x1xf32> to vector<16x128xf32>
    %27 = arith.mulf %26, %25 : vector<16x128xf32>
    %28 = arith.mulf %27, %25 : vector<16x128xf32>
    %cst_19 = arith.constant dense<0.000000e+00> : vector<128xf32>
    %29 = vector.multi_reduction <add>, %28, %cst_19 [0] : vector<16x128xf32> to vector<128xf32>
    %30 = vector.shape_cast %29 : vector<128xf32> to vector<1x128xf32>
    %cst_20 = arith.constant 9.99999974E-6 : f32
    %31 = vector.broadcast %cst_20 : f32 to vector<1x128xf32>
    %32 = arith.addf %30, %31 : vector<1x128xf32>
    %33 = math.rsqrt %32 : vector<1x128xf32>
    %34 = vector.broadcast %33 : vector<1x128xf32> to vector<16x128xf32>
    %35 = arith.mulf %25, %34 : vector<16x128xf32>
    %cst_21 = arith.constant 0.000000e+00 : f32
    %36 = vector.broadcast %cst_21 : f32 to vector<16x128xf32>
    %37 = arith.maximumf %35, %36 : vector<16x128xf32>
    %c0_22 = arith.constant 0 : index
    %c0_23 = arith.constant 0 : index
    %38 = vector.load %arg8[%c0_22, %c0_23] : memref<128x128xbf16, #tpu.memory_space<vmem>>, vector<128x128xbf16>
    %c0_24 = arith.constant 0 : index
    %c0_25 = arith.constant 0 : index
    %39 = vector.load %arg9[%c0_24, %c0_25] : memref<1x128xf32, #tpu.memory_space<vmem>>, vector<1x128xf32>
    %40 = arith.truncf %37 : vector<16x128xf32> to vector<16x128xbf16>
    %cst_26 = arith.constant dense<0.000000e+00> : vector<16x128xf32>
    %41 = tpu.matmul %40, %38, %cst_26 {dimension_numbers = #tpu.dot_dimension_numbers<[1], [0], [0], [1], [0, 0, 1, 1], [], []>} : vector<16x128xbf16>, vector<128x128xbf16>, vector<16x128xf32> -> vector<16x128xf32>
    %42 = arith.truncf %41 : vector<16x128xf32> to vector<16x128xbf16>
    %cst_27 = arith.constant dense<0.000000e+00> : vector<16x128xf32>
    %43 = tpu.matmul %0, %42, %cst_27 {dimension_numbers = #tpu.dot_dimension_numbers<[1], [0], [0], [1], [0, 0, 1, 1], [], []>} : vector<16x16xbf16>, vector<16x128xbf16>, vector<16x128xf32> -> vector<16x128xf32>
    %44 = vector.broadcast %39 : vector<1x128xf32> to vector<16x128xf32>
    %45 = arith.addf %43, %44 : vector<16x128xf32>
    %46 = vector.broadcast %2 : vector<16x1xf32> to vector<16x128xf32>
    %47 = arith.mulf %46, %45 : vector<16x128xf32>
    %cst_28 = arith.constant dense<0.000000e+00> : vector<128xf32>
    %48 = vector.multi_reduction <add>, %47, %cst_28 [0] : vector<16x128xf32> to vector<128xf32>
    %49 = vector.shape_cast %48 : vector<128xf32> to vector<1x128xf32>
    %50 = vector.broadcast %49 : vector<1x128xf32> to vector<16x128xf32>
    %51 = arith.subf %45, %50 : vector<16x128xf32>
    %52 = vector.broadcast %2 : vector<16x1xf32> to vector<16x128xf32>
    %53 = arith.mulf %52, %51 : vector<16x128xf32>
    %54 = arith.mulf %53, %51 : vector<16x128xf32>
    %cst_29 = arith.constant dense<0.000000e+00> : vector<128xf32>
    %55 = vector.multi_reduction <add>, %54, %cst_29 [0] : vector<16x128xf32> to vector<128xf32>
    %56 = vector.shape_cast %55 : vector<128xf32> to vector<1x128xf32>
    %cst_30 = arith.constant 9.99999974E-6 : f32
    %57 = vector.broadcast %cst_30 : f32 to vector<1x128xf32>
    %58 = arith.addf %56, %57 : vector<1x128xf32>
    %59 = math.rsqrt %58 : vector<1x128xf32>
    %60 = vector.broadcast %59 : vector<1x128xf32> to vector<16x128xf32>
    %61 = arith.mulf %51, %60 : vector<16x128xf32>
    %cst_31 = arith.constant 0.000000e+00 : f32
    %62 = vector.broadcast %cst_31 : f32 to vector<16x128xf32>
    %63 = arith.maximumf %61, %62 : vector<16x128xf32>
    %64 = arith.addf %63, %37 : vector<16x128xf32>
    %c0_32 = arith.constant 0 : index
    %c0_33 = arith.constant 0 : index
    %65 = vector.load %arg10[%c0_32, %c0_33] : memref<128x128xbf16, #tpu.memory_space<vmem>>, vector<128x128xbf16>
    %c0_34 = arith.constant 0 : index
    %c0_35 = arith.constant 0 : index
    %66 = vector.load %arg11[%c0_34, %c0_35] : memref<1x128xf32, #tpu.memory_space<vmem>>, vector<1x128xf32>
    %67 = arith.truncf %64 : vector<16x128xf32> to vector<16x128xbf16>
    %cst_36 = arith.constant dense<0.000000e+00> : vector<16x128xf32>
    %68 = tpu.matmul %67, %65, %cst_36 {dimension_numbers = #tpu.dot_dimension_numbers<[1], [0], [0], [1], [0, 0, 1, 1], [], []>} : vector<16x128xbf16>, vector<128x128xbf16>, vector<16x128xf32> -> vector<16x128xf32>
    %69 = arith.truncf %68 : vector<16x128xf32> to vector<16x128xbf16>
    %cst_37 = arith.constant dense<0.000000e+00> : vector<16x128xf32>
    %70 = tpu.matmul %0, %69, %cst_37 {dimension_numbers = #tpu.dot_dimension_numbers<[1], [0], [0], [1], [0, 0, 1, 1], [], []>} : vector<16x16xbf16>, vector<16x128xbf16>, vector<16x128xf32> -> vector<16x128xf32>
    %71 = vector.broadcast %66 : vector<1x128xf32> to vector<16x128xf32>
    %72 = arith.addf %70, %71 : vector<16x128xf32>
    %73 = vector.broadcast %2 : vector<16x1xf32> to vector<16x128xf32>
    %74 = arith.mulf %73, %72 : vector<16x128xf32>
    %cst_38 = arith.constant dense<0.000000e+00> : vector<128xf32>
    %75 = vector.multi_reduction <add>, %74, %cst_38 [0] : vector<16x128xf32> to vector<128xf32>
    %76 = vector.shape_cast %75 : vector<128xf32> to vector<1x128xf32>
    %77 = vector.broadcast %76 : vector<1x128xf32> to vector<16x128xf32>
    %78 = arith.subf %72, %77 : vector<16x128xf32>
    %79 = vector.broadcast %2 : vector<16x1xf32> to vector<16x128xf32>
    %80 = arith.mulf %79, %78 : vector<16x128xf32>
    %81 = arith.mulf %80, %78 : vector<16x128xf32>
    %cst_39 = arith.constant dense<0.000000e+00> : vector<128xf32>
    %82 = vector.multi_reduction <add>, %81, %cst_39 [0] : vector<16x128xf32> to vector<128xf32>
    %83 = vector.shape_cast %82 : vector<128xf32> to vector<1x128xf32>
    %cst_40 = arith.constant 9.99999974E-6 : f32
    %84 = vector.broadcast %cst_40 : f32 to vector<1x128xf32>
    %85 = arith.addf %83, %84 : vector<1x128xf32>
    %86 = math.rsqrt %85 : vector<1x128xf32>
    %87 = vector.broadcast %86 : vector<1x128xf32> to vector<16x128xf32>
    %88 = arith.mulf %78, %87 : vector<16x128xf32>
    %cst_41 = arith.constant 0.000000e+00 : f32
    %89 = vector.broadcast %cst_41 : f32 to vector<16x128xf32>
    %90 = arith.maximumf %88, %89 : vector<16x128xf32>
    %91 = arith.addf %90, %64 : vector<16x128xf32>
    %92 = arith.truncf %91 : vector<16x128xf32> to vector<16x128xbf16>
    %cst_42 = arith.constant dense<0.000000e+00> : vector<8x128xf32>
    %93 = tpu.matmul %1, %92, %cst_42 {dimension_numbers = #tpu.dot_dimension_numbers<[1], [0], [0], [1], [0, 0, 1, 1], [], []>} : vector<8x16xbf16>, vector<16x128xbf16>, vector<8x128xf32> -> vector<8x128xf32>
    %94 = arith.truncf %93 : vector<8x128xf32> to vector<8x128xbf16>
    %c0_43 = arith.constant 0 : index
    %c0_44 = arith.constant 0 : index
    %95 = vector.load %arg12[%c0_43, %c0_44] : memref<128x128xbf16, #tpu.memory_space<vmem>>, vector<128x128xbf16>
    %cst_45 = arith.constant dense<0.000000e+00> : vector<8x128xf32>
    %96 = tpu.matmul %94, %95, %cst_45 {dimension_numbers = #tpu.dot_dimension_numbers<[1], [0], [0], [1], [0, 0, 1, 1], [], []>} : vector<8x128xbf16>, vector<128x128xbf16>, vector<8x128xf32> -> vector<8x128xf32>
    %c0_46 = arith.constant 0 : index
    %c0_47 = arith.constant 0 : index
    %97 = vector.load %arg13[%c0_46, %c0_47] : memref<1x128xf32, #tpu.memory_space<vmem>>, vector<1x128xf32>
    %98 = vector.broadcast %97 : vector<1x128xf32> to vector<8x128xf32>
    %99 = arith.addf %96, %98 : vector<8x128xf32>
    %100 = math.tanh %99 : vector<8x128xf32>
    %101 = arith.truncf %100 : vector<8x128xf32> to vector<8x128xbf16>
    %c0_48 = arith.constant 0 : index
    %c0_49 = arith.constant 0 : index
    %102 = vector.load %arg14[%c0_48, %c0_49] : memref<128x128xbf16, #tpu.memory_space<vmem>>, vector<128x128xbf16>
    %cst_50 = arith.constant dense<0.000000e+00> : vector<8x128xf32>
    %103 = tpu.matmul %101, %102, %cst_50 {dimension_numbers = #tpu.dot_dimension_numbers<[1], [0], [0], [1], [0, 0, 1, 1], [], []>} : vector<8x128xbf16>, vector<128x128xbf16>, vector<8x128xf32> -> vector<8x128xf32>
    %c0_51 = arith.constant 0 : index
    %c0_52 = arith.constant 0 : index
    %104 = vector.load %arg15[%c0_51, %c0_52] : memref<1x128xf32, #tpu.memory_space<vmem>>, vector<1x128xf32>
    %105 = vector.broadcast %104 : vector<1x128xf32> to vector<8x128xf32>
    %106 = arith.addf %103, %105 : vector<8x128xf32>
    %107 = math.tanh %106 : vector<8x128xf32>
    %108 = arith.truncf %107 : vector<8x128xf32> to vector<8x128xbf16>
    %c0_53 = arith.constant 0 : index
    %c0_54 = arith.constant 0 : index
    %109 = vector.load %arg16[%c0_53, %c0_54] : memref<128x128xbf16, #tpu.memory_space<vmem>>, vector<128x128xbf16>
    %cst_55 = arith.constant dense<0.000000e+00> : vector<8x128xf32>
    %110 = tpu.matmul %108, %109, %cst_55 {dimension_numbers = #tpu.dot_dimension_numbers<[1], [0], [0], [1], [0, 0, 1, 1], [], []>} : vector<8x128xbf16>, vector<128x128xbf16>, vector<8x128xf32> -> vector<8x128xf32>
    %c0_56 = arith.constant 0 : index
    %c0_57 = arith.constant 0 : index
    %111 = vector.load %arg17[%c0_56, %c0_57] : memref<1x128xf32, #tpu.memory_space<vmem>>, vector<1x128xf32>
    %112 = vector.broadcast %111 : vector<1x128xf32> to vector<8x128xf32>
    %113 = arith.addf %110, %112 : vector<8x128xf32>
    %c0_58 = arith.constant 0 : index
    %c0_59 = arith.constant 0 : index
    %114 = vector.load %arg18[%c0_58, %c0_59] : memref<8x128xf32, #tpu.memory_space<vmem>>, vector<8x128xf32>
    tpu.vector_store %arg18[%c0_58, %c0_59], %113 {strides = array<i32>} : memref<8x128xf32, #tpu.memory_space<vmem>>, vector<8x128xf32>,
    return
  }
}

</mosaic_0001>

<llo_original>
// kernel: graphnet_forward.1
$region0: #{graphnet_forward.1}
  #allocation0 [shape = 'u32[]', space=smem, size = 0x4, offset = 0x4, fixed_abs, tag = 'smem constant byte address 0x4 - core index']
  #allocation1 [shape = 'u32[72,128]{1,0:T(1,128)}', space=vmem, size = 0x9000, scoped, tag = 'internal scratch']
  %s0 = inlined_call_operand.vmem [shape: bf16[16,16], index: 0, kind: input, shape index: {}]
  %s1 = inlined_call_operand.vmem [shape: bf16[8,16], index: 1, kind: input, shape index: {}]
  %s2 = inlined_call_operand.vmem [shape: f32[16,1], index: 2, kind: input, shape index: {}]
  %s3 = inlined_call_operand.vmem [shape: f32[16,128], index: 3, kind: input, shape index: {}]
  %s4 = inlined_call_operand.vmem [shape: bf16[128,128], index: 4, kind: input, shape index: {}]
  %s5 = inlined_call_operand.vmem [shape: f32[1,128], index: 5, kind: input, shape index: {}]
  %s6 = inlined_call_operand.vmem [shape: bf16[128,128], index: 6, kind: input, shape index: {}]
  %s7 = inlined_call_operand.vmem [shape: f32[1,128], index: 7, kind: input, shape index: {}]
  %s8 = inlined_call_operand.vmem [shape: bf16[128,128], index: 8, kind: input, shape index: {}]
  %s9 = inlined_call_operand.vmem [shape: f32[1,128], index: 9, kind: input, shape index: {}]
  %s10 = inlined_call_operand.vmem [shape: bf16[128,128], index: 10, kind: input, shape index: {}]
  %s11 = inlined_call_operand.vmem [shape: f32[1,128], index: 11, kind: input, shape index: {}]
  %s12 = inlined_call_operand.vmem [shape: bf16[128,128], index: 12, kind: input, shape index: {}]
  %s13 = inlined_call_operand.vmem [shape: f32[1,128], index: 13, kind: input, shape index: {}]
  %s14 = inlined_call_operand.vmem [shape: bf16[128,128], index: 14, kind: input, shape index: {}]
  %s15 = inlined_call_operand.vmem [shape: f32[1,128], index: 15, kind: input, shape index: {}]
  %s16 = inlined_call_operand.vmem [shape: bf16[128,128], index: 16, kind: input, shape index: {}]
  %s17 = inlined_call_operand.vmem [shape: f32[1,128], index: 17, kind: input, shape index: {}]
  %s18 = inlined_call_operand.vmem [shape: f32[8,128], index: 18, kind: output, shape index: {}]
  %s19 = sld [smem:[#allocation0]]
  $region82: #{graphnet_forward.1} parent=0
    _
  %s21 = ssub.s32 1, %s19
  %s22 = scalar_select 0, %s21, %s19
  // Predicated region
  $region2: #{graphnet_forward.1} parent=0 // pred_check
    _
  $region3: #{graphnet_forward.1} parent=0 // pred_check_branch
    %24 = sbr.rel (0) target = $region5
  $region4: #{graphnet_forward.1} parent=0 // pred_region
    _
  $region5: #{graphnet_forward.1} parent=0 // pred_fallthru
    _
  // Predicated region
  $region6: #{graphnet_forward.1} parent=0 // pred_check
    _
  $region7: #{graphnet_forward.1} parent=0 // pred_check_branch
    %26 = sbr.rel (0) target = $region9
  $region8: #{graphnet_forward.1} parent=0 // pred_region
    _
  $region9: #{graphnet_forward.1} parent=0 // pred_fallthru
    _
  // Predicated region
  $region10: #{graphnet_forward.1} parent=0 // pred_check
    _
  $region11: #{graphnet_forward.1} parent=0 // pred_check_branch
    %28 = sbr.rel (0) target = $region13
  $region12: #{graphnet_forward.1} parent=0 // pred_region
    _
  $region13: #{graphnet_forward.1} parent=0 // pred_fallthru
    _
  // Predicated region
  $region14: #{graphnet_forward.1} parent=0 // pred_check
    _
  $region15: #{graphnet_forward.1} parent=0 // pred_check_branch
    %30 = sbr.rel (0) target = $region17
  $region16: #{graphnet_forward.1} parent=0 // pred_region
    _
  $region17: #{graphnet_forward.1} parent=0 // pred_fallthru
    _
  // Predicated region
  $region18: #{graphnet_forward.1} parent=0 // pred_check
    _
  $region19: #{graphnet_forward.1} parent=0 // pred_check_branch
    %32 = sbr.rel (0) target = $region21
  $region20: #{graphnet_forward.1} parent=0 // pred_region
    _
  $region21: #{graphnet_forward.1} parent=0 // pred_fallthru
    _
  // Predicated region
  $region22: #{graphnet_forward.1} parent=0 // pred_check
    _
  $region23: #{graphnet_forward.1} parent=0 // pred_check_branch
    %34 = sbr.rel (0) target = $region25
  $region24: #{graphnet_forward.1} parent=0 // pred_region
    _
  $region25: #{graphnet_forward.1} parent=0 // pred_fallthru
    _
  // Predicated region
  $region26: #{graphnet_forward.1} parent=0 // pred_check
    _
  $region27: #{graphnet_forward.1} parent=0 // pred_check_branch
    %36 = sbr.rel (0) target = $region29
  $region28: #{graphnet_forward.1} parent=0 // pred_region
    _
  $region29: #{graphnet_forward.1} parent=0 // pred_fallthru
    _
  // Predicated region
  $region30: #{graphnet_forward.1} parent=0 // pred_check
    _
  $region31: #{graphnet_forward.1} parent=0 // pred_check_branch
    %38 = sbr.rel (0) target = $region33
  $region32: #{graphnet_forward.1} parent=0 // pred_region
    _
  $region33: #{graphnet_forward.1} parent=0 // pred_fallthru
    _
  // Predicated region
  $region34: #{graphnet_forward.1} parent=0 // pred_check
    _
  $region35: #{graphnet_forward.1} parent=0 // pred_check_branch
    %40 = sbr.rel (0) target = $region37
  $region36: #{graphnet_forward.1} parent=0 // pred_region
    _
  $region37: #{graphnet_forward.1} parent=0 // pred_fallthru
    _
  // Predicated region
  $region38: #{graphnet_forward.1} parent=0 // pred_check
    _
  $region39: #{graphnet_forward.1} parent=0 // pred_check_branch
    %42 = sbr.rel (0) target = $region41
  $region40: #{graphnet_forward.1} parent=0 // pred_region
    _
  $region41: #{graphnet_forward.1} parent=0 // pred_fallthru
    _
  // Predicated region
  $region42: #{graphnet_forward.1} parent=0 // pred_check
    _
  $region43: #{graphnet_forward.1} parent=0 // pred_check_branch
    %44 = sbr.rel (0) target = $region45
  $region44: #{graphnet_forward.1} parent=0 // pred_region
    _
  $region45: #{graphnet_forward.1} parent=0 // pred_fallthru
    _
  // Predicated region
  $region46: #{graphnet_forward.1} parent=0 // pred_check
    _
  $region47: #{graphnet_forward.1} parent=0 // pred_check_branch
    %46 = sbr.rel (0) target = $region49
  $region48: #{graphnet_forward.1} parent=0 // pred_region
    _
  $region49: #{graphnet_forward.1} parent=0 // pred_fallthru
    _
  // Predicated region
  $region50: #{graphnet_forward.1} parent=0 // pred_check
    _
  $region51: #{graphnet_forward.1} parent=0 // pred_check_branch
    %48 = sbr.rel (0) target = $region53
  $region52: #{graphnet_forward.1} parent=0 // pred_region
    _
  $region53: #{graphnet_forward.1} parent=0 // pred_fallthru
    _
  // Predicated region
  $region54: #{graphnet_forward.1} parent=0 // pred_check
    _
  $region55: #{graphnet_forward.1} parent=0 // pred_check_branch
    %50 = sbr.rel (0) target = $region57
  $region56: #{graphnet_forward.1} parent=0 // pred_region
    _
  $region57: #{graphnet_forward.1} parent=0 // pred_fallthru
    _
  // Predicated region
  $region58: #{graphnet_forward.1} parent=0 // pred_check
    _
  $region59: #{graphnet_forward.1} parent=0 // pred_check_branch
    %52 = sbr.rel (0) target = $region61
  $region60: #{graphnet_forward.1} parent=0 // pred_region
    _
  $region61: #{graphnet_forward.1} parent=0 // pred_fallthru
    _
  // Predicated region
  $region62: #{graphnet_forward.1} parent=0 // pred_check
    _
  $region63: #{graphnet_forward.1} parent=0 // pred_check_branch
    %54 = sbr.rel (0) target = $region65
  $region64: #{graphnet_forward.1} parent=0 // pred_region
    _
  $region65: #{graphnet_forward.1} parent=0 // pred_fallthru
    _
  // Predicated region
  $region66: #{graphnet_forward.1} parent=0 // pred_check
    _
  $region67: #{graphnet_forward.1} parent=0 // pred_check_branch
    %56 = sbr.rel (0) target = $region69
  $region68: #{graphnet_forward.1} parent=0 // pred_region
    _
  $region69: #{graphnet_forward.1} parent=0 // pred_fallthru
    _
  // Predicated region
  $region70: #{graphnet_forward.1} parent=0 // pred_check
    _
  $region71: #{graphnet_forward.1} parent=0 // pred_check_branch
    %58 = sbr.rel (0) target = $region73
  $region72: #{graphnet_forward.1} parent=0 // pred_region
    _
  $region73: #{graphnet_forward.1} parent=0 // pred_fallthru
    _
  %v60 = vld [vmem:[%s0] sm:$0xf]
  %v61 = vld [vmem:[%s0 + $0x4] sm:$0xf]
  %v62 = vld [vmem:[%s1] sm:$0xf]
  %v63 = vld [vmem:[%s2] sm:$0xff]
  %v64 = vld [vmem:[%s2 + $0x8] sm:$0xff]
  %v65 = vld [vmem:[%s3] sm:$0xff]
  %v66 = vld [vmem:[%s3 + $0x8] sm:$0xff]
  %v67 = vpack.c.bf16 %v66, %v65
  %v68 = vld [vmem:[%s4] sm:$0xf]
  %v69 = vld [vmem:[%s4 + $0x4] sm:$0xf]
  %v70 = vld [vmem:[%s4 + $0x8] sm:$0xf]
  %v71 = vld [vmem:[%s4 + $0xc] sm:$0xf]
  %v72 = vld [vmem:[%s4 + $0x10] sm:$0xf]
  %v73 = vld [vmem:[%s4 + $0x14] sm:$0xf]
  %v74 = vld [vmem:[%s4 + $0x18] sm:$0xf]
  %v75 = vld [vmem:[%s4 + $0x1c] sm:$0xf]
  %v76 = vld [vmem:[%s4 + $0x20] sm:$0xf]
  %v77 = vld [vmem:[%s4 + $0x24] sm:$0xf]
  %v78 = vld [vmem:[%s4 + $0x28] sm:$0xf]
  %v79 = vld [vmem:[%s4 + $0x2c] sm:$0xf]
  %v80 = vld [vmem:[%s4 + $0x30] sm:$0xf]
  %v81 = vld [vmem:[%s4 + $0x34] sm:$0xf]
  %v82 = vld [vmem:[%s4 + $0x38] sm:$0xf]
  %v83 = vld [vmem:[%s4 + $0x3c] sm:$0xf]
  %v84 = vld [vmem:[%s5] sm:$0x1]
  %v86 = vperm.slane %v84, 0
  %v104 = vunpack.c.l.b16 %v68
  %v105 = vunpack.c.l.b16 %v69
  %v106 = vunpack.c.l.b16 %v70
  %v107 = vunpack.c.l.b16 %v71
  %v108 = vunpack.c.l.b16 %v72
  %v109 = vunpack.c.l.b16 %v73
  %v110 = vunpack.c.l.b16 %v74
  %v111 = vunpack.c.l.b16 %v75
  %v112 = vunpack.c.l.b16 %v76
  %v113 = vunpack.c.l.b16 %v77
  %v114 = vunpack.c.l.b16 %v78
  %v115 = vunpack.c.l.b16 %v79
  %v116 = vunpack.c.l.b16 %v80
  %v117 = vunpack.c.l.b16 %v81
  %v118 = vunpack.c.l.b16 %v82
  %v119 = vunpack.c.l.b16 %v83
  %v120 = vpack.c.b16 %v105, %v104
  %v121 = vpack.c.b16 %v107, %v106
  %v122 = vpack.c.b16 %v109, %v108
  %v123 = vpack.c.b16 %v111, %v110
  %v124 = vpack.c.b16 %v113, %v112
  %v125 = vpack.c.b16 %v115, %v114
  %v126 = vpack.c.b16 %v117, %v116
  %v127 = vpack.c.b16 %v119, %v118
  %136 = vmatpush.bf16.msra.mxu0 %v127
  %137 = vmatpush.bf16.msra.mxu0 %v126
  %138 = vmatpush.bf16.msra.mxu0 %v125
  %139 = vmatpush.bf16.msra.mxu0 %v124
  %140 = vmatpush.bf16.msra.mxu0 %v123
  %141 = vmatpush.bf16.msra.mxu0 %v122
  %142 = vmatpush.bf16.msra.mxu0 %v121
  %143 = vmatpush.bf16.msra.mxu0 %v120
  %144 = vmatmul.bf16.gmra.mxu0 %v67
  %v145 = vpop.f32.mrf.mxu0
  %v146 = vadd.f32 %v86, %v145
  %v147 = vpop.f32.mrf.mxu0
  %v148 = vadd.f32 %v86, %v147
  %149 = vdwg.mxu0
  %v150 = vmax.f32 %v146, 0.0
  %v151 = vmax.f32 %v148, 0.0
  %v152 = vld [vmem:[%s6] sm:$0xf]
  %v153 = vld [vmem:[%s6 + $0x4] sm:$0xf]
  %v154 = vld [vmem:[%s6 + $0x8] sm:$0xf]
  %v155 = vld [vmem:[%s6 + $0xc] sm:$0xf]
  %v156 = vld [vmem:[%s6 + $0x10] sm:$0xf]
  %v157 = vld [vmem:[%s6 + $0x14] sm:$0xf]
  %v158 = vld [vmem:[%s6 + $0x18] sm:$0xf]
  %v159 = vld [vmem:[%s6 + $0x1c] sm:$0xf]
  %v160 = vld [vmem:[%s6 + $0x20] sm:$0xf]
  %v161 = vld [vmem:[%s6 + $0x24] sm:$0xf]
  %v162 = vld [vmem:[%s6 + $0x28] sm:$0xf]
  %v163 = vld [vmem:[%s6 + $0x2c] sm:$0xf]
  %v164 = vld [vmem:[%s6 + $0x30] sm:$0xf]
  %v165 = vld [vmem:[%s6 + $0x34] sm:$0xf]
  %v166 = vld [vmem:[%s6 + $0x38] sm:$0xf]
  %v167 = vld [vmem:[%s6 + $0x3c] sm:$0xf]
  %v168 = vld [vmem:[%s7] sm:$0x1]
  %v169 = vpack.c.bf16 %v151, %v150
  %v186 = vunpack.c.l.b16 %v152
  %v187 = vunpack.c.l.b16 %v153
  %v188 = vunpack.c.l.b16 %v154
  %v189 = vunpack.c.l.b16 %v155
  %v190 = vunpack.c.l.b16 %v156
  %v191 = vunpack.c.l.b16 %v157
  %v192 = vunpack.c.l.b16 %v158
  %v193 = vunpack.c.l.b16 %v159
  %v194 = vunpack.c.l.b16 %v160
  %v195 = vunpack.c.l.b16 %v161
  %v196 = vunpack.c.l.b16 %v162
  %v197 = vunpack.c.l.b16 %v163
  %v198 = vunpack.c.l.b16 %v164
  %v199 = vunpack.c.l.b16 %v165
  %v200 = vunpack.c.l.b16 %v166
  %v201 = vunpack.c.l.b16 %v167
  %v202 = vpack.c.b16 %v187, %v186
  %v203 = vpack.c.b16 %v189, %v188
  %v204 = vpack.c.b16 %v191, %v190
  %v205 = vpack.c.b16 %v193, %v192
  %v206 = vpack.c.b16 %v195, %v194
  %v207 = vpack.c.b16 %v197, %v196
  %v208 = vpack.c.b16 %v199, %v198
  %v209 = vpack.c.b16 %v201, %v200
  %218 = vmatpush.bf16.msra.mxu0 %v209
  %219 = vmatpush.bf16.msra.mxu0 %v208
  %220 = vmatpush.bf16.msra.mxu0 %v207
  %221 = vmatpush.bf16.msra.mxu0 %v206
  %222 = vmatpush.bf16.msra.mxu0 %v205
  %223 = vmatpush.bf16.msra.mxu0 %v204
  %224 = vmatpush.bf16.msra.mxu0 %v203
  %225 = vmatpush.bf16.msra.mxu0 %v202
  %226 = vmatmul.bf16.gmra.mxu0 %v169
  %v227 = vpop.f32.mrf.mxu0
  %v228 = vadd.f32 0.0, %v227
  %v229 = vpop.f32.mrf.mxu0
  %v230 = vadd.f32 0.0, %v229
  %231 = vdwg.mxu0
  %v232 = vpack.c.bf16 %v230, %v228
  %v234 = vperm.slane %v168, 0
  %v238 = vunpack.c.l.b16 %v60
  %v239 = vunpack.c.l.b16 %v61
  %v240 = vpack.c.b16 %v239, %v238
  %vm241 = vcmask 130048
  %v243 = vsel %vm241, %v240, 0
  %245 = vmatpush.bf16.msra.mxu0 0
  %246 = vmatpush.bf16.msra.mxu0 0
  %247 = vmatpush.bf16.msra.mxu0 0
  %248 = vmatpush.bf16.msra.mxu0 0
  %249 = vmatpush.bf16.msra.mxu0 0
  %250 = vmatpush.bf16.msra.mxu0 0
  %251 = vmatpush.bf16.msra.mxu0 0
  %252 = vmatpush.bf16.msra.mxu0 %v232
  %253 = vmatmul.bf16.gmra.mxu0 %v243
  %v254 = vpop.f32.mrf.mxu0
  %v255 = vadd.f32 %v234, %v254
  %v256 = vpop.f32.mrf.mxu0
  %v257 = vadd.f32 %v234, %v256
  %258 = vdwg.mxu0
  %260 = vset.pattern.permute.xlu0 0
  %261 = vperm.xlu0 %260, %v63
  %v262 = vpop.permute.xlu0 %261
  %265 = vset.pattern.permute.xlu0 0
  %266 = vperm.xlu0 %265, %v64
  %v267 = vpop.permute.xlu0 %266
  %v269 = vmul.f32 %v262, %v255
  %v270 = vmul.f32 %v267, %v257
  %v271 = vadd.f32 %v269, %v270
  %v272 = vrot.slane %v271, 4
  %v273 = vadd.f32 %v271, %v272
  %v274 = vrot.slane %v273, 2
  %v275 = vadd.f32 %v273, %v274
  %v276 = vrot.slane %v275, 1
  %v277 = vadd.f32 %v275, %v276
  %v278 = vsub.f32 %v255, %v277
  %v279 = vsub.f32 %v257, %v277
  %v280 = vmul.f32 %v262, %v278
  %v281 = vmul.f32 %v267, %v279
  %v282 = vmul.f32 %v280, %v278
  %v283 = vmul.f32 %v281, %v279
  %v284 = vadd.f32 %v282, %v283
  %v285 = vrot.slane %v284, 4
  %v286 = vadd.f32 %v284, %v285
  %v287 = vrot.slane %v286, 2
  %v288 = vadd.f32 %v286, %v287
  %v289 = vrot.slane %v288, 1
  %v290 = vadd.f32 %v288, %v289
  %v291 = vadd.f32 %v290, 1e-05
  %v292 = vrsqrt.pop %v291
  %v293 = vmul.f32 %v292, %v291
  %v294 = vmul.f32 %v293, %v292
  %v295 = vmul.f32 0.5, %v294
  %v296 = vsub.f32 1.5, %v295
  %v297 = vmul.f32 %v292, %v296
  %vm298 = vweird.f32 %v291
  %vm299 = vweird.f32 %v292
  %vm300 = vmor %vm298, %vm299
  %v301 = vsel %vm300, %v292, %v297
  %v302 = vmul.f32 %v278, %v301
  %v303 = vmul.f32 %v279, %v301
  %v304 = vmax.f32 %v302, 0.0
  %v305 = vmax.f32 %v303, 0.0
  %v306 = vld [vmem:[%s8] sm:$0xf]
  %v307 = vld [vmem:[%s8 + $0x4] sm:$0xf]
  %v308 = vld [vmem:[%s8 + $0x8] sm:$0xf]
  %v309 = vld [vmem:[%s8 + $0xc] sm:$0xf]
  %v310 = vld [vmem:[%s8 + $0x10] sm:$0xf]
  %v311 = vld [vmem:[%s8 + $0x14] sm:$0xf]
  %v312 = vld [vmem:[%s8 + $0x18] sm:$0xf]
  %v313 = vld [vmem:[%s8 + $0x1c] sm:$0xf]
  %v314 = vld [vmem:[%s8 + $0x20] sm:$0xf]
  %v315 = vld [vmem:[%s8 + $0x24] sm:$0xf]
  %v316 = vld [vmem:[%s8 + $0x28] sm:$0xf]
  %v317 = vld [vmem:[%s8 + $0x2c] sm:$0xf]
  %v318 = vld [vmem:[%s8 + $0x30] sm:$0xf]
  %v319 = vld [vmem:[%s8 + $0x34] sm:$0xf]
  %v320 = vld [vmem:[%s8 + $0x38] sm:$0xf]
  %v321 = vld [vmem:[%s8 + $0x3c] sm:$0xf]
  %v322 = vld [vmem:[%s9] sm:$0x1]
  %v323 = vpack.c.bf16 %v305, %v304
  %v340 = vunpack.c.l.b16 %v306
  %v341 = vunpack.c.l.b16 %v307
  %v342 = vunpack.c.l.b16 %v308
  %v343 = vunpack.c.l.b16 %v309
  %v344 = vunpack.c.l.b16 %v310
  %v345 = vunpack.c.l.b16 %v311
  %v346 = vunpack.c.l.b16 %v312
  %v347 = vunpack.c.l.b16 %v313
  %v348 = vunpack.c.l.b16 %v314
  %v349 = vunpack.c.l.b16 %v315
  %v350 = vunpack.c.l.b16 %v316
  %v351 = vunpack.c.l.b16 %v317
  %v352 = vunpack.c.l.b16 %v318
  %v353 = vunpack.c.l.b16 %v319
  %v354 = vunpack.c.l.b16 %v320
  %v355 = vunpack.c.l.b16 %v321
  %v356 = vpack.c.b16 %v341, %v340
  %v357 = vpack.c.b16 %v343, %v342
  %v358 = vpack.c.b16 %v345, %v344
  %v359 = vpack.c.b16 %v347, %v346
  %v360 = vpack.c.b16 %v349, %v348
  %v361 = vpack.c.b16 %v351, %v350
  %v362 = vpack.c.b16 %v353, %v352
  %v363 = vpack.c.b16 %v355, %v354
  %372 = vmatpush.bf16.msra.mxu0 %v363
  %373 = vmatpush.bf16.msra.mxu0 %v362
  %374 = vmatpush.bf16.msra.mxu0 %v361
  %375 = vmatpush.bf16.msra.mxu0 %v360
  %376 = vmatpush.bf16.msra.mxu0 %v359
  %377 = vmatpush.bf16.msra.mxu0 %v358
  %378 = vmatpush.bf16.msra.mxu0 %v357
  %379 = vmatpush.bf16.msra.mxu0 %v356
  %380 = vmatmul.bf16.gmra.mxu0 %v323
  %v381 = vpop.f32.mrf.mxu0
  %v382 = vadd.f32 0.0, %v381
  %v383 = vpop.f32.mrf.mxu0
  %v384 = vadd.f32 0.0, %v383
  %385 = vdwg.mxu0
  %v386 = vpack.c.bf16 %v384, %v382
  %v388 = vperm.slane %v322, 0
  %390 = vmatpush.bf16.msra.mxu0 0
  %391 = vmatpush.bf16.msra.mxu0 0
  %392 = vmatpush.bf16.msra.mxu0 0
  %393 = vmatpush.bf16.msra.mxu0 0
  %394 = vmatpush.bf16.msra.mxu0 0
  %395 = vmatpush.bf16.msra.mxu0 0
  %396 = vmatpush.bf16.msra.mxu0 0
  %397 = vmatpush.bf16.msra.mxu0 %v386
  %398 = vmatmul.bf16.gmra.mxu0 %v243
  %v399 = vpop.f32.mrf.mxu0
  %v400 = vadd.f32 %v388, %v399
  %v401 = vpop.f32.mrf.mxu0
  %v402 = vadd.f32 %v388, %v401
  %403 = vdwg.mxu0
  %v404 = vmul.f32 %v262, %v400
  %v405 = vmul.f32 %v267, %v402
  %v406 = vadd.f32 %v404, %v405
  %v407 = vrot.slane %v406, 4
  %v408 = vadd.f32 %v406, %v407
  %v409 = vrot.slane %v408, 2
  %v410 = vadd.f32 %v408, %v409
  %v411 = vrot.slane %v410, 1
  %v412 = vadd.f32 %v410, %v411
  %v413 = vsub.f32 %v400, %v412
  %v414 = vsub.f32 %v402, %v412
  %v415 = vmul.f32 %v262, %v413
  %v416 = vmul.f32 %v267, %v414
  %v417 = vmul.f32 %v415, %v413
  %v418 = vmul.f32 %v416, %v414
  %v419 = vadd.f32 %v417, %v418
  %v420 = vrot.slane %v419, 4
  %v421 = vadd.f32 %v419, %v420
  %v422 = vrot.slane %v421, 2
  %v423 = vadd.f32 %v421, %v422
  %v424 = vrot.slane %v423, 1
  %v425 = vadd.f32 %v423, %v424
  %v426 = vadd.f32 %v425, 1e-05
  %v427 = vrsqrt.pop %v426
  %v428 = vmul.f32 %v427, %v426
  %v429 = vmul.f32 %v428, %v427
  %v430 = vmul.f32 0.5, %v429
  %v431 = vsub.f32 1.5, %v430
  %v432 = vmul.f32 %v427, %v431
  %vm433 = vweird.f32 %v426
  %vm434 = vweird.f32 %v427
  %vm435 = vmor %vm433, %vm434
  %v436 = vsel %vm435, %v427, %v432
  %v437 = vmul.f32 %v413, %v436
  %v438 = vmul.f32 %v414, %v436
  %v439 = vmax.f32 %v437, 0.0
  %v440 = vmax.f32 %v438, 0.0
  %v441 = vadd.f32 %v439, %v304
  %v442 = vadd.f32 %v440, %v305
  %v443 = vld [vmem:[%s10] sm:$0xf]
  %v444 = vld [vmem:[%s10 + $0x4] sm:$0xf]
  %v445 = vld [vmem:[%s10 + $0x8] sm:$0xf]
  %v446 = vld [vmem:[%s10 + $0xc] sm:$0xf]
  %v447 = vld [vmem:[%s10 + $0x10] sm:$0xf]
  %v448 = vld [vmem:[%s10 + $0x14] sm:$0xf]
  %v449 = vld [vmem:[%s10 + $0x18] sm:$0xf]
  %v450 = vld [vmem:[%s10 + $0x1c] sm:$0xf]
  %v451 = vld [vmem:[%s10 + $0x20] sm:$0xf]
  %v452 = vld [vmem:[%s10 + $0x24] sm:$0xf]
  %v453 = vld [vmem:[%s10 + $0x28] sm:$0xf]
  %v454 = vld [vmem:[%s10 + $0x2c] sm:$0xf]
  %v455 = vld [vmem:[%s10 + $0x30] sm:$0xf]
  %v456 = vld [vmem:[%s10 + $0x34] sm:$0xf]
  %v457 = vld [vmem:[%s10 + $0x38] sm:$0xf]
  %v458 = vld [vmem:[%s10 + $0x3c] sm:$0xf]
  %v459 = vld [vmem:[%s11] sm:$0x1]
  %v460 = vpack.c.bf16 %v442, %v441
  %v477 = vunpack.c.l.b16 %v443
  %v478 = vunpack.c.l.b16 %v444
  %v479 = vunpack.c.l.b16 %v445
  %v480 = vunpack.c.l.b16 %v446
  %v481 = vunpack.c.l.b16 %v447
  %v482 = vunpack.c.l.b16 %v448
  %v483 = vunpack.c.l.b16 %v449
  %v484 = vunpack.c.l.b16 %v450
  %v485 = vunpack.c.l.b16 %v451
  %v486 = vunpack.c.l.b16 %v452
  %v487 = vunpack.c.l.b16 %v453
  %v488 = vunpack.c.l.b16 %v454
  %v489 = vunpack.c.l.b16 %v455
  %v490 = vunpack.c.l.b16 %v456
  %v491 = vunpack.c.l.b16 %v457
  %v492 = vunpack.c.l.b16 %v458
  %v493 = vpack.c.b16 %v478, %v477
  %v494 = vpack.c.b16 %v480, %v479
  %v495 = vpack.c.b16 %v482, %v481
  %v496 = vpack.c.b16 %v484, %v483
  %v497 = vpack.c.b16 %v486, %v485
  %v498 = vpack.c.b16 %v488, %v487
  %v499 = vpack.c.b16 %v490, %v489
  %v500 = vpack.c.b16 %v492, %v491
  %509 = vmatpush.bf16.msra.mxu0 %v500
  %510 = vmatpush.bf16.msra.mxu0 %v499
  %511 = vmatpush.bf16.msra.mxu0 %v498
  %512 = vmatpush.bf16.msra.mxu0 %v497
  %513 = vmatpush.bf16.msra.mxu0 %v496
  %514 = vmatpush.bf16.msra.mxu0 %v495
  %515 = vmatpush.bf16.msra.mxu0 %v494
  %516 = vmatpush.bf16.msra.mxu0 %v493
  %517 = vmatmul.bf16.gmra.mxu0 %v460
  %v518 = vpop.f32.mrf.mxu0
  %v519 = vadd.f32 0.0, %v518
  %v520 = vpop.f32.mrf.mxu0
  %v521 = vadd.f32 0.0, %v520
  %522 = vdwg.mxu0
  %v523 = vpack.c.bf16 %v521, %v519
  %v525 = vperm.slane %v459, 0
  %527 = vmatpush.bf16.msra.mxu0 0
  %528 = vmatpush.bf16.msra.mxu0 0
  %529 = vmatpush.bf16.msra.mxu0 0
  %530 = vmatpush.bf16.msra.mxu0 0
  %531 = vmatpush.bf16.msra.mxu0 0
  %532 = vmatpush.bf16.msra.mxu0 0
  %533 = vmatpush.bf16.msra.mxu0 0
  %534 = vmatpush.bf16.msra.mxu0 %v523
  %535 = vmatmul.bf16.gmra.mxu0 %v243
  %v536 = vpop.f32.mrf.mxu0
  %v537 = vadd.f32 %v525, %v536
  %v538 = vpop.f32.mrf.mxu0
  %v539 = vadd.f32 %v525, %v538
  %540 = vdwg.mxu0
  %v541 = vmul.f32 %v262, %v537
  %v542 = vmul.f32 %v267, %v539
  %v543 = vadd.f32 %v541, %v542
  %v544 = vrot.slane %v543, 4
  %v545 = vadd.f32 %v543, %v544
  %v546 = vrot.slane %v545, 2
  %v547 = vadd.f32 %v545, %v546
  %v548 = vrot.slane %v547, 1
  %v549 = vadd.f32 %v547, %v548
  %v550 = vsub.f32 %v537, %v549
  %v551 = vsub.f32 %v539, %v549
  %v552 = vmul.f32 %v262, %v550
  %v553 = vmul.f32 %v267, %v551
  %v554 = vmul.f32 %v552, %v550
  %v555 = vmul.f32 %v553, %v551
  %v556 = vadd.f32 %v554, %v555
  %v557 = vrot.slane %v556, 4
  %v558 = vadd.f32 %v556, %v557
  %v559 = vrot.slane %v558, 2
  %v560 = vadd.f32 %v558, %v559
  %v561 = vrot.slane %v560, 1
  %v562 = vadd.f32 %v560, %v561
  %v563 = vadd.f32 %v562, 1e-05
  %v564 = vrsqrt.pop %v563
  %v565 = vmul.f32 %v564, %v563
  %v566 = vmul.f32 %v565, %v564
  %v567 = vmul.f32 0.5, %v566
  %v568 = vsub.f32 1.5, %v567
  %v569 = vmul.f32 %v564, %v568
  %vm570 = vweird.f32 %v563
  %vm571 = vweird.f32 %v564
  %vm572 = vmor %vm570, %vm571
  %v573 = vsel %vm572, %v564, %v569
  %v574 = vmul.f32 %v550, %v573
  %v575 = vmul.f32 %v551, %v573
  %v576 = vmax.f32 %v574, 0.0
  %v577 = vmax.f32 %v575, 0.0
  %v578 = vadd.f32 %v576, %v441
  %v579 = vadd.f32 %v577, %v442
  %v580 = vpack.c.bf16 %v579, %v578
  %v582 = vsel %vm241, %v62, 0
  %584 = vmatpush.bf16.msra.mxu0 0
  %585 = vmatpush.bf16.msra.mxu0 0
  %586 = vmatpush.bf16.msra.mxu0 0
  %587 = vmatpush.bf16.msra.mxu0 0
  %588 = vmatpush.bf16.msra.mxu0 0
  %589 = vmatpush.bf16.msra.mxu0 0
  %590 = vmatpush.bf16.msra.mxu0 0
  %591 = vmatpush.bf16.msra.mxu0 %v580
  %592 = vmatmul.bf16.gmra.mxu0 %v582
  %v593 = vpop.f32.mrf.mxu0
  %v594 = vadd.f32 0.0, %v593
  %v595 = vpop.f32.mrf.mxu0
  %596 = vdwg.mxu0
  %v597 = vpack.c.bf16 %v594, %v594
  %v598 = vld [vmem:[%s12] sm:$0xf]
  %v599 = vld [vmem:[%s12 + $0x4] sm:$0xf]
  %v600 = vld [vmem:[%s12 + $0x8] sm:$0xf]
  %v601 = vld [vmem:[%s12 + $0xc] sm:$0xf]
  %v602 = vld [vmem:[%s12 + $0x10] sm:$0xf]
  %v603 = vld [vmem:[%s12 + $0x14] sm:$0xf]
  %v604 = vld [vmem:[%s12 + $0x18] sm:$0xf]
  %v605 = vld [vmem:[%s12 + $0x1c] sm:$0xf]
  %v606 = vld [vmem:[%s12 + $0x20] sm:$0xf]
  %v607 = vld [vmem:[%s12 + $0x24] sm:$0xf]
  %v608 = vld [vmem:[%s12 + $0x28] sm:$0xf]
  %v609 = vld [vmem:[%s12 + $0x2c] sm:$0xf]
  %v610 = vld [vmem:[%s12 + $0x30] sm:$0xf]
  %v611 = vld [vmem:[%s12 + $0x34] sm:$0xf]
  %v612 = vld [vmem:[%s12 + $0x38] sm:$0xf]
  %v613 = vld [vmem:[%s12 + $0x3c] sm:$0xf]
  %v614 = vld [vmem:[%s13] sm:$0x1]
  %v616 = vperm.slane %v614, 0
  %v634 = vunpack.c.l.b16 %v598
  %v635 = vunpack.c.l.b16 %v599
  %v636 = vunpack.c.l.b16 %v600
  %v637 = vunpack.c.l.b16 %v601
  %v638 = vunpack.c.l.b16 %v602
  %v639 = vunpack.c.l.b16 %v603
  %v640 = vunpack.c.l.b16 %v604
  %v641 = vunpack.c.l.b16 %v605
  %v642 = vunpack.c.l.b16 %v606
  %v643 = vunpack.c.l.b16 %v607
  %v644 = vunpack.c.l.b16 %v608
  %v645 = vunpack.c.l.b16 %v609
  %v646 = vunpack.c.l.b16 %v610
  %v647 = vunpack.c.l.b16 %v611
  %v648 = vunpack.c.l.b16 %v612
  %v649 = vunpack.c.l.b16 %v613
  %v650 = vpack.c.b16 %v635, %v634
  %v651 = vpack.c.b16 %v637, %v636
  %v652 = vpack.c.b16 %v639, %v638
  %v653 = vpack.c.b16 %v641, %v640
  %v654 = vpack.c.b16 %v643, %v642
  %v655 = vpack.c.b16 %v645, %v644
  %v656 = vpack.c.b16 %v647, %v646
  %v657 = vpack.c.b16 %v649, %v648
  %666 = vmatpush.bf16.msra.mxu0 %v657
  %667 = vmatpush.bf16.msra.mxu0 %v656
  %668 = vmatpush.bf16.msra.mxu0 %v655
  %669 = vmatpush.bf16.msra.mxu0 %v654
  %670 = vmatpush.bf16.msra.mxu0 %v653
  %671 = vmatpush.bf16.msra.mxu0 %v652
  %672 = vmatpush.bf16.msra.mxu0 %v651
  %673 = vmatpush.bf16.msra.mxu0 %v650
  %674 = vmatmul.bf16.gmra.mxu0 %v597
  %v675 = vpop.f32.mrf.mxu0
  %v676 = vadd.f32 %v616, %v675
  %v677 = vpop.f32.mrf.mxu0
  %678 = vdwg.mxu0
  %v679 = vtanh.pop %v676
  %v680 = vpack.c.bf16 %v679, %v679
  %v681 = vld [vmem:[%s14] sm:$0xf]
  %v682 = vld [vmem:[%s14 + $0x4] sm:$0xf]
  %v683 = vld [vmem:[%s14 + $0x8] sm:$0xf]
  %v684 = vld [vmem:[%s14 + $0xc] sm:$0xf]
  %v685 = vld [vmem:[%s14 + $0x10] sm:$0xf]
  %v686 = vld [vmem:[%s14 + $0x14] sm:$0xf]
  %v687 = vld [vmem:[%s14 + $0x18] sm:$0xf]
  %v688 = vld [vmem:[%s14 + $0x1c] sm:$0xf]
  %v689 = vld [vmem:[%s14 + $0x20] sm:$0xf]
  %v690 = vld [vmem:[%s14 + $0x24] sm:$0xf]
  %v691 = vld [vmem:[%s14 + $0x28] sm:$0xf]
  %v692 = vld [vmem:[%s14 + $0x2c] sm:$0xf]
  %v693 = vld [vmem:[%s14 + $0x30] sm:$0xf]
  %v694 = vld [vmem:[%s14 + $0x34] sm:$0xf]
  %v695 = vld [vmem:[%s14 + $0x38] sm:$0xf]
  %v696 = vld [vmem:[%s14 + $0x3c] sm:$0xf]
  %v697 = vld [vmem:[%s15] sm:$0x1]
  %v699 = vperm.slane %v697, 0
  %v717 = vunpack.c.l.b16 %v681
  %v718 = vunpack.c.l.b16 %v682
  %v719 = vunpack.c.l.b16 %v683
  %v720 = vunpack.c.l.b16 %v684
  %v721 = vunpack.c.l.b16 %v685
  %v722 = vunpack.c.l.b16 %v686
  %v723 = vunpack.c.l.b16 %v687
  %v724 = vunpack.c.l.b16 %v688
  %v725 = vunpack.c.l.b16 %v689
  %v726 = vunpack.c.l.b16 %v690
  %v727 = vunpack.c.l.b16 %v691
  %v728 = vunpack.c.l.b16 %v692
  %v729 = vunpack.c.l.b16 %v693
  %v730 = vunpack.c.l.b16 %v694
  %v731 = vunpack.c.l.b16 %v695
  %v732 = vunpack.c.l.b16 %v696
  %v733 = vpack.c.b16 %v718, %v717
  %v734 = vpack.c.b16 %v720, %v719
  %v735 = vpack.c.b16 %v722, %v721
  %v736 = vpack.c.b16 %v724, %v723
  %v737 = vpack.c.b16 %v726, %v725
  %v738 = vpack.c.b16 %v728, %v727
  %v739 = vpack.c.b16 %v730, %v729
  %v740 = vpack.c.b16 %v732, %v731
  %749 = vmatpush.bf16.msra.mxu0 %v740
  %750 = vmatpush.bf16.msra.mxu0 %v739
  %751 = vmatpush.bf16.msra.mxu0 %v738
  %752 = vmatpush.bf16.msra.mxu0 %v737
  %753 = vmatpush.bf16.msra.mxu0 %v736
  %754 = vmatpush.bf16.msra.mxu0 %v735
  %755 = vmatpush.bf16.msra.mxu0 %v734
  %756 = vmatpush.bf16.msra.mxu0 %v733
  %757 = vmatmul.bf16.gmra.mxu0 %v680
  %v758 = vpop.f32.mrf.mxu0
  %v759 = vadd.f32 %v699, %v758
  %v760 = vpop.f32.mrf.mxu0
  %761 = vdwg.mxu0
  %v762 = vtanh.pop %v759
  %v763 = vpack.c.bf16 %v762, %v762
  %v764 = vld [vmem:[%s16] sm:$0xf]
  %v765 = vld [vmem:[%s16 + $0x4] sm:$0xf]
  %v766 = vld [vmem:[%s16 + $0x8] sm:$0xf]
  %v767 = vld [vmem:[%s16 + $0xc] sm:$0xf]
  %v768 = vld [vmem:[%s16 + $0x10] sm:$0xf]
  %v769 = vld [vmem:[%s16 + $0x14] sm:$0xf]
  %v770 = vld [vmem:[%s16 + $0x18] sm:$0xf]
  %v771 = vld [vmem:[%s16 + $0x1c] sm:$0xf]
  %v772 = vld [vmem:[%s16 + $0x20] sm:$0xf]
  %v773 = vld [vmem:[%s16 + $0x24] sm:$0xf]
  %v774 = vld [vmem:[%s16 + $0x28] sm:$0xf]
  %v775 = vld [vmem:[%s16 + $0x2c] sm:$0xf]
  %v776 = vld [vmem:[%s16 + $0x30] sm:$0xf]
  %v777 = vld [vmem:[%s16 + $0x34] sm:$0xf]
  %v778 = vld [vmem:[%s16 + $0x38] sm:$0xf]
  %v779 = vld [vmem:[%s16 + $0x3c] sm:$0xf]
  %v780 = vld [vmem:[%s17] sm:$0x1]
  %v782 = vperm.slane %v780, 0
  %v800 = vunpack.c.l.b16 %v764
  %v801 = vunpack.c.l.b16 %v765
  %v802 = vunpack.c.l.b16 %v766
  %v803 = vunpack.c.l.b16 %v767
  %v804 = vunpack.c.l.b16 %v768
  %v805 = vunpack.c.l.b16 %v769
  %v806 = vunpack.c.l.b16 %v770
  %v807 = vunpack.c.l.b16 %v771
  %v808 = vunpack.c.l.b16 %v772
  %v809 = vunpack.c.l.b16 %v773
  %v810 = vunpack.c.l.b16 %v774
  %v811 = vunpack.c.l.b16 %v775
  %v812 = vunpack.c.l.b16 %v776
  %v813 = vunpack.c.l.b16 %v777
  %v814 = vunpack.c.l.b16 %v778
  %v815 = vunpack.c.l.b16 %v779
  %v816 = vpack.c.b16 %v801, %v800
  %v817 = vpack.c.b16 %v803, %v802
  %v818 = vpack.c.b16 %v805, %v804
  %v819 = vpack.c.b16 %v807, %v806
  %v820 = vpack.c.b16 %v809, %v808
  %v821 = vpack.c.b16 %v811, %v810
  %v822 = vpack.c.b16 %v813, %v812
  %v823 = vpack.c.b16 %v815, %v814
  %832 = vmatpush.bf16.msra.mxu0 %v823
  %833 = vmatpush.bf16.msra.mxu0 %v822
  %834 = vmatpush.bf16.msra.mxu0 %v821
  %835 = vmatpush.bf16.msra.mxu0 %v820
  %836 = vmatpush.bf16.msra.mxu0 %v819
  %837 = vmatpush.bf16.msra.mxu0 %v818
  %838 = vmatpush.bf16.msra.mxu0 %v817
  %839 = vmatpush.bf16.msra.mxu0 %v816
  %840 = vmatmul.bf16.gmra.mxu0 %v763
  %v841 = vpop.f32.mrf.mxu0
  %v842 = vadd.f32 %v782, %v841
  %v843 = vpop.f32.mrf.mxu0
  %844 = vdwg.mxu0
  %845 = vst [vmem:[%s18] sm:$0xff] %v842
  // Predicated region
  $region74: #{graphnet_forward.1} parent=0 // pred_check
    _
  $region75: #{graphnet_forward.1} parent=0 // pred_check_branch
    %847 = sbr.rel (0) target = $region77
  $region76: #{graphnet_forward.1} parent=0 // pred_region
    _
  $region77: #{graphnet_forward.1} parent=0 // pred_fallthru
    _
  // Predicated region
  $region78: #{graphnet_forward.1} parent=0 // pred_check
    _
  $region79: #{graphnet_forward.1} parent=0 // pred_check_branch
    %849 = sbr.rel (0) target = $region81
  $region80: #{graphnet_forward.1} parent=0 // pred_region
    _
  $region81: #{graphnet_forward.1} parent=0 // pred_fallthru
    _

</llo_original>
